<compile_context>
chip_gen: v7x
topology: tpu7x:2x2x1
jax: 0.10.0
libtpu: 0.0.40
codegen_flags: <defaults>
</compile_context>

<pallas_src>
import jax
import jax.numpy as jnp
from jax.experimental import pallas as pl
from jax.experimental.pallas import tpu as pltpu


# ----------------------------------------------------------------------------
# Kernels
# ----------------------------------------------------------------------------

def _residual_small_c_kernel(x_ref, w_ref, b_ref, o_ref):
    """VPU path for small C.  Blocks are (1, C, S, 128) -> per channel (S,128).

    w_ref is a flat (C*C,) SMEM ref with the residual identity already folded
    in, b_ref is a (C,) SMEM ref, so: out[co] = b[co] + sum_ci w[co,ci]*x[ci].
    Scalar reads from SMEM splat via the scalar unit; all vector work is FMAs
    on dense (S, 128) tiles.
    """
    c = x_ref.shape[1]
    for co in range(c):
        acc = (w_ref[co * c].astype(jnp.float32)
               * x_ref[0, 0].astype(jnp.float32))
        for ci in range(1, c):
            acc = acc + (w_ref[co * c + ci].astype(jnp.float32)
                         * x_ref[0, ci].astype(jnp.float32))
        o_ref[0, co] = (acc + b_ref[co].astype(jnp.float32)).astype(o_ref.dtype)


def _residual_mxu_kernel(x_ref, w_ref, b_ref, o_ref):
    """MXU path.  Residual already folded into the weight: out = W'@x + b."""
    x = x_ref[0]                                            # (C, TS), lanes=HW
    y = jnp.dot(w_ref[...], x, preferred_element_type=jnp.float32)
    o_ref[0] = (y + b_ref[...].astype(jnp.float32)).astype(o_ref.dtype)


# ----------------------------------------------------------------------------
# Tiling / budgeting helpers
# ----------------------------------------------------------------------------

def _round_up(x, m):
    return ((x + m - 1) // m) * m


def _sublane(dtype):
    # rows packed per 32-bit word: 8 for f32, 16 for bf16, 32 for int8/fp8
    return max(8, 32 // jnp.dtype(dtype).itemsize)


def _padded_bytes(rows, cols, dtype, count=1):
    """VMEM footprint of `count` blocks whose minor-two dims are (rows, cols)."""
    it = jnp.dtype(dtype).itemsize
    r = _round_up(max(rows, 1), _sublane(dtype))
    c = _round_up(max(cols, 1), 128)
    return count * r * c * it


def _vmem_cap_bytes():
    """Scoped-VMEM cap derived from the chip generation."""
    try:
        cap = int(pltpu.get_tpu_info().vmem_capacity_bytes)
    except Exception:  # noqa: BLE001 - conservative fallback (v7x-sized)
        cap = 64 << 20
    if cap <= 0:
        cap = 64 << 20
    if cap >= (100 << 20):          # v5e / v6e: 128 MiB physical
        return 100 << 20
    return 48 << 20                 # v7x: 64 MiB physical


def _pick_divisor(n, is_legal, fits, gives_min_steps):
    """Largest divisor of n that is legal, fits the budget and (if possible)
    yields enough total grid steps; falls back gracefully otherwise."""
    cands = [d for d in range(1, n + 1) if n % d == 0 and is_legal(d)]
    if not cands:
        return n
    fit = [d for d in cands if fits(d)] or [min(cands)]
    ok = [d for d in fit if gives_min_steps(d)]
    return max(ok) if ok else max(fit)


# ----------------------------------------------------------------------------
# Wrapper
# ----------------------------------------------------------------------------

def residual_pointwise_conv(x_nchw, weight, bias):
    """Residual(Conv2d 1x1)(x) = (W + I) @ x + b.  NCHW in / NCHW out.

    x_nchw: [N, C, H, W];  weight: [C, C] (1x1 kernel squeezed);  bias: [C].
    """
    N, C, H, W = x_nchw.shape
    HW = H * W
    x_dtype = x_nchw.dtype

    # Fold the residual identity into the weight (rides free in the matmul /
    # FMA accumulation; removes a full per-tile f32 copy+add of x).
    w_eff = (weight.astype(jnp.float32)
             + jnp.eye(C, dtype=jnp.float32)).astype(weight.dtype)

    vmem_cap = _vmem_cap_bytes()
    headroom = 4 << 20
    min_steps = 4

    x3 = x_nchw.reshape(N, C, HW)                 # free reshape, no transpose

    if C <= 16:
        # ---------------- dense-(S,128) VPU path, W/b in SMEM ----------------
        HWp = _round_up(HW, 128)
        R = HWp // 128
        # Make R a multiple of 8 only if the extra padding traffic is <= ~6%.
        Rpad = _round_up(R, 8)
        if R >= 8 and (Rpad - R) * 16 <= R:
            R, HWp = Rpad, Rpad * 128
        if HWp != HW:
            x3 = jnp.pad(x3, ((0, 0), (0, 0), (0, HWp - HW)))
        x4 = x3.reshape(N, C, R, 128)

        budget = max(vmem_cap - headroom, 1 << 20)
        # Compile-time guard on the fully unrolled FMA count.
        s_cap = max(8, (32768 // max(C * C, 1) // 8) * 8)

        def is_legal(s):
            return (s % 8 == 0) or (s == R)

        def per_tile_bytes(s):
            io = _padded_bytes(s, 128, x_dtype, count=C)         # in OR out
            f32 = _padded_bytes(s, 128, jnp.float32, count=C)    # accumulators
            return 4 * io + f32                                  # 2x in + 2x out

        def fits(s):
            return per_tile_bytes(s) <= budget and s <= s_cap

        def min_ok(s):
            return N * (R // s) >= min_steps

        S = _pick_divisor(R, is_legal, fits, min_ok)
        grid = (N, R // S)

        need = per_tile_bytes(S) + headroom
        vmem_limit = int(min(max(need, 32 << 20), vmem_cap))

        out4 = pl.pallas_call(
            _residual_small_c_kernel,
            out_shape=jax.ShapeDtypeStruct((N, C, R, 128), x_dtype),
            grid_spec=pltpu.PrefetchScalarGridSpec(
                num_scalar_prefetch=0,
                grid=grid,
                in_specs=[
                    pl.BlockSpec((1, C, S, 128), lambda n, j: (n, 0, j, 0)),
                    pl.BlockSpec(memory_space=pltpu.MemorySpace.SMEM),  # W' flat
                    pl.BlockSpec(memory_space=pltpu.MemorySpace.SMEM),  # bias
                ],
                out_specs=pl.BlockSpec((1, C, S, 128),
                                       lambda n, j: (n, 0, j, 0)),
            ),
            compiler_params=pltpu.CompilerParams(
                dimension_semantics=("parallel", "parallel"),
                vmem_limit_bytes=vmem_limit,
            ),
        )(x4, w_eff.reshape(C * C), bias)

        out3 = out4.reshape(N, C, HWp)
    else:
        # ----------------------------- MXU path ------------------------------
        HWp = _round_up(HW, 128)
        if HWp != HW:
            x3 = jnp.pad(x3, ((0, 0), (0, 0), (0, HWp - HW)))
        nblk = HWp // 128

        w_bytes = _padded_bytes(C, C, w_eff.dtype)
        b_bytes = _padded_bytes(C, 1, bias.dtype)
        budget = max(vmem_cap - headroom - 2 * (w_bytes + b_bytes), 1 << 20)

        def per_tile_bytes(d):
            ts = d * 128
            io = _padded_bytes(C, ts, x_dtype)                   # in OR out
            f32 = _padded_bytes(C, ts, jnp.float32)              # dot result
            return 4 * io + f32                                  # 2x in + 2x out

        def fits(d):
            return per_tile_bytes(d) <= budget

        def min_ok(d):
            return N * (nblk // d) >= min_steps

        D = _pick_divisor(nblk, lambda d: True, fits, min_ok)
        TS = D * 128
        grid = (N, nblk // D)

        need = per_tile_bytes(D) + 2 * (w_bytes + b_bytes) + headroom
        vmem_limit = int(min(max(need, 32 << 20), vmem_cap))

        out3 = pl.pallas_call(
            _residual_mxu_kernel,
            out_shape=jax.ShapeDtypeStruct((N, C, HWp), x_dtype),
            grid_spec=pltpu.PrefetchScalarGridSpec(
                num_scalar_prefetch=0,
                grid=grid,
                in_specs=[
                    pl.BlockSpec((1, C, TS), lambda n, j: (n, 0, j)),   # x
                    pl.BlockSpec((C, C), lambda n, j: (0, 0)),          # W'
                    pl.BlockSpec((C, 1), lambda n, j: (0, 0)),          # b
                ],
                out_specs=pl.BlockSpec((1, C, TS), lambda n, j: (n, 0, j)),
            ),
            compiler_params=pltpu.CompilerParams(
                dimension_semantics=("parallel", "parallel"),
                vmem_limit_bytes=vmem_limit,
            ),
        )(x3, w_eff, bias.reshape(C, 1))

    return out3[:, :, :HW].reshape(N, C, H, W)


# ----------------------------------------------------------------------------
# Demo / self-check
# ----------------------------------------------------------------------------

def _reference(x, weight, bias):
    return (jnp.einsum('oc,nchw->nohw', weight, x)
            + bias[None, :, None, None] + x)


if __name__ == "__main__":
    key = jax.random.PRNGKey(0)

    # Small-C (VPU / SMEM) path: N=2, C=4, 16x16.
    k1, k2, k3, k4, k5, k6 = jax.random.split(key, 6)
    x_a = jax.random.normal(k1, (2, 4, 16, 16), dtype=jnp.float32)
    w_a = jax.random.normal(k2, (4, 4), dtype=jnp.float32) * 0.1
    b_a = jax.random.normal(k3, (4,), dtype=jnp.float32) * 0.1
    out_a = jax.block_until_ready(residual_pointwise_conv(x_a, w_a, b_a))
    ref_a = _reference(x_a, w_a, b_a)
    assert out_a.shape == x_a.shape and out_a.dtype == x_a.dtype
    assert jnp.allclose(out_a, ref_a, atol=1e-4, rtol=1e-4)

    # MXU path (also exercises HW padding to a 128 multiple): N=2, C=64, 8x8.
    x_b = jax.random.normal(k4, (2, 64, 8, 8), dtype=jnp.float32)
    w_b = jax.random.normal(k5, (64, 64), dtype=jnp.float32) * 0.05
    b_b = jax.random.normal(k6, (64,), dtype=jnp.float32) * 0.1
    out_b = jax.block_until_ready(residual_pointwise_conv(x_b, w_b, b_b))
    ref_b = _reference(x_b, w_b, b_b)
    assert out_b.shape == x_b.shape and out_b.dtype == x_b.dtype
    assert jnp.allclose(out_b, ref_b, atol=1e-4, rtol=1e-4)

    print("KERNEL_OK")
</pallas_src>

<mosaic_0001>
module attributes {stable_mosaic.version = 11 : i64} {
  func.func @_residual_small_c_kernel(%arg0: i32, %arg1: i32, %arg2: memref<1x4x2x128xf32, #tpu.memory_space<vmem>>, %arg3: memref<16xf32, #tpu.memory_space<smem>>, %arg4: memref<4xf32, #tpu.memory_space<smem>>, %arg5: memref<1x4x2x128xf32, #tpu.memory_space<vmem>>) attributes {dimension_semantics = [#tpu.dimension_semantics<parallel>, #tpu.dimension_semantics<parallel>], iteration_bounds = array<i64: 2, 1>, scalar_prefetch = 0 : i64, scratch_operands = 0 : i64, tpu.core_type = #tpu.core_type<tc>, window_params = [{transform_indices = @transform_0, window_bounds = array<i64: 1, 4, 2, 128>}, {transform_indices = @transform_1, window_bounds = array<i64: 16>}, {transform_indices = @transform_2, window_bounds = array<i64: 4>}, {transform_indices = @transform_3, window_bounds = array<i64: 1, 4, 2, 128>}]} {
    %c0 = arith.constant 0 : index
    %0 = memref.load %arg3[%c0] : memref<16xf32, #tpu.memory_space<smem>>
    %c0_0 = arith.constant 0 : index
    %c0_1 = arith.constant 0 : index
    %c0_2 = arith.constant 0 : index
    %c0_3 = arith.constant 0 : index
    %1 = vector.load %arg2[%c0_0, %c0_1, %c0_2, %c0_3] : memref<1x4x2x128xf32, #tpu.memory_space<vmem>>, vector<1x1x2x128xf32>
    %2 = vector.shape_cast %1 : vector<1x1x2x128xf32> to vector<2x128xf32>
    %3 = vector.broadcast %0 : f32 to vector<2x128xf32>
    %4 = arith.mulf %3, %2 : vector<2x128xf32>
    %c1 = arith.constant 1 : index
    %5 = memref.load %arg3[%c1] : memref<16xf32, #tpu.memory_space<smem>>
    %c0_4 = arith.constant 0 : index
    %c1_5 = arith.constant 1 : index
    %c0_6 = arith.constant 0 : index
    %c0_7 = arith.constant 0 : index
    %6 = vector.load %arg2[%c0_4, %c1_5, %c0_6, %c0_7] : memref<1x4x2x128xf32, #tpu.memory_space<vmem>>, vector<1x1x2x128xf32>
    %7 = vector.shape_cast %6 : vector<1x1x2x128xf32> to vector<2x128xf32>
    %8 = vector.broadcast %5 : f32 to vector<2x128xf32>
    %9 = arith.mulf %8, %7 : vector<2x128xf32>
    %10 = arith.addf %4, %9 : vector<2x128xf32>
    %c2 = arith.constant 2 : index
    %11 = memref.load %arg3[%c2] : memref<16xf32, #tpu.memory_space<smem>>
    %c0_8 = arith.constant 0 : index
    %c2_9 = arith.constant 2 : index
    %c0_10 = arith.constant 0 : index
    %c0_11 = arith.constant 0 : index
    %12 = vector.load %arg2[%c0_8, %c2_9, %c0_10, %c0_11] : memref<1x4x2x128xf32, #tpu.memory_space<vmem>>, vector<1x1x2x128xf32>
    %13 = vector.shape_cast %12 : vector<1x1x2x128xf32> to vector<2x128xf32>
    %14 = vector.broadcast %11 : f32 to vector<2x128xf32>
    %15 = arith.mulf %14, %13 : vector<2x128xf32>
    %16 = arith.addf %10, %15 : vector<2x128xf32>
    %c3 = arith.constant 3 : index
    %17 = memref.load %arg3[%c3] : memref<16xf32, #tpu.memory_space<smem>>
    %c0_12 = arith.constant 0 : index
    %c3_13 = arith.constant 3 : index
    %c0_14 = arith.constant 0 : index
    %c0_15 = arith.constant 0 : index
    %18 = vector.load %arg2[%c0_12, %c3_13, %c0_14, %c0_15] : memref<1x4x2x128xf32, #tpu.memory_space<vmem>>, vector<1x1x2x128xf32>
    %19 = vector.shape_cast %18 : vector<1x1x2x128xf32> to vector<2x128xf32>
    %20 = vector.broadcast %17 : f32 to vector<2x128xf32>
    %21 = arith.mulf %20, %19 : vector<2x128xf32>
    %22 = arith.addf %16, %21 : vector<2x128xf32>
    %c0_16 = arith.constant 0 : index
    %23 = memref.load %arg4[%c0_16] : memref<4xf32, #tpu.memory_space<smem>>
    %24 = vector.broadcast %23 : f32 to vector<2x128xf32>
    %25 = arith.addf %22, %24 : vector<2x128xf32>
    %c0_17 = arith.constant 0 : index
    %c0_18 = arith.constant 0 : index
    %c0_19 = arith.constant 0 : index
    %c0_20 = arith.constant 0 : index
    %26 = vector.load %arg5[%c0_17, %c0_18, %c0_19, %c0_20] : memref<1x4x2x128xf32, #tpu.memory_space<vmem>>, vector<1x1x2x128xf32>
    %27 = vector.shape_cast %26 : vector<1x1x2x128xf32> to vector<2x128xf32>
    %28 = vector.shape_cast %25 : vector<2x128xf32> to vector<1x1x2x128xf32>
    tpu.vector_store %arg5[%c0_17, %c0_18, %c0_19, %c0_20], %28 {strides = array<i32>} : memref<1x4x2x128xf32, #tpu.memory_space<vmem>>, vector<1x1x2x128xf32>,
    %c4 = arith.constant 4 : index
    %29 = memref.load %arg3[%c4] : memref<16xf32, #tpu.memory_space<smem>>
    %c0_21 = arith.constant 0 : index
    %c0_22 = arith.constant 0 : index
    %c0_23 = arith.constant 0 : index
    %c0_24 = arith.constant 0 : index
    %30 = vector.load %arg2[%c0_21, %c0_22, %c0_23, %c0_24] : memref<1x4x2x128xf32, #tpu.memory_space<vmem>>, vector<1x1x2x128xf32>
    %31 = vector.shape_cast %30 : vector<1x1x2x128xf32> to vector<2x128xf32>
    %32 = vector.broadcast %29 : f32 to vector<2x128xf32>
    %33 = arith.mulf %32, %31 : vector<2x128xf32>
    %c5 = arith.constant 5 : index
    %34 = memref.load %arg3[%c5] : memref<16xf32, #tpu.memory_space<smem>>
    %c0_25 = arith.constant 0 : index
    %c1_26 = arith.constant 1 : index
    %c0_27 = arith.constant 0 : index
    %c0_28 = arith.constant 0 : index
    %35 = vector.load %arg2[%c0_25, %c1_26, %c0_27, %c0_28] : memref<1x4x2x128xf32, #tpu.memory_space<vmem>>, vector<1x1x2x128xf32>
    %36 = vector.shape_cast %35 : vector<1x1x2x128xf32> to vector<2x128xf32>
    %37 = vector.broadcast %34 : f32 to vector<2x128xf32>
    %38 = arith.mulf %37, %36 : vector<2x128xf32>
    %39 = arith.addf %33, %38 : vector<2x128xf32>
    %c6 = arith.constant 6 : index
    %40 = memref.load %arg3[%c6] : memref<16xf32, #tpu.memory_space<smem>>
    %c0_29 = arith.constant 0 : index
    %c2_30 = arith.constant 2 : index
    %c0_31 = arith.constant 0 : index
    %c0_32 = arith.constant 0 : index
    %41 = vector.load %arg2[%c0_29, %c2_30, %c0_31, %c0_32] : memref<1x4x2x128xf32, #tpu.memory_space<vmem>>, vector<1x1x2x128xf32>
    %42 = vector.shape_cast %41 : vector<1x1x2x128xf32> to vector<2x128xf32>
    %43 = vector.broadcast %40 : f32 to vector<2x128xf32>
    %44 = arith.mulf %43, %42 : vector<2x128xf32>
    %45 = arith.addf %39, %44 : vector<2x128xf32>
    %c7 = arith.constant 7 : index
    %46 = memref.load %arg3[%c7] : memref<16xf32, #tpu.memory_space<smem>>
    %c0_33 = arith.constant 0 : index
    %c3_34 = arith.constant 3 : index
    %c0_35 = arith.constant 0 : index
    %c0_36 = arith.constant 0 : index
    %47 = vector.load %arg2[%c0_33, %c3_34, %c0_35, %c0_36] : memref<1x4x2x128xf32, #tpu.memory_space<vmem>>, vector<1x1x2x128xf32>
    %48 = vector.shape_cast %47 : vector<1x1x2x128xf32> to vector<2x128xf32>
    %49 = vector.broadcast %46 : f32 to vector<2x128xf32>
    %50 = arith.mulf %49, %48 : vector<2x128xf32>
    %51 = arith.addf %45, %50 : vector<2x128xf32>
    %c1_37 = arith.constant 1 : index
    %52 = memref.load %arg4[%c1_37] : memref<4xf32, #tpu.memory_space<smem>>
    %53 = vector.broadcast %52 : f32 to vector<2x128xf32>
    %54 = arith.addf %51, %53 : vector<2x128xf32>
    %c0_38 = arith.constant 0 : index
    %c1_39 = arith.constant 1 : index
    %c0_40 = arith.constant 0 : index
    %c0_41 = arith.constant 0 : index
    %55 = vector.load %arg5[%c0_38, %c1_39, %c0_40, %c0_41] : memref<1x4x2x128xf32, #tpu.memory_space<vmem>>, vector<1x1x2x128xf32>
    %56 = vector.shape_cast %55 : vector<1x1x2x128xf32> to vector<2x128xf32>
    %57 = vector.shape_cast %54 : vector<2x128xf32> to vector<1x1x2x128xf32>
    tpu.vector_store %arg5[%c0_38, %c1_39, %c0_40, %c0_41], %57 {strides = array<i32>} : memref<1x4x2x128xf32, #tpu.memory_space<vmem>>, vector<1x1x2x128xf32>,
    %c8 = arith.constant 8 : index
    %58 = memref.load %arg3[%c8] : memref<16xf32, #tpu.memory_space<smem>>
    %c0_42 = arith.constant 0 : index
    %c0_43 = arith.constant 0 : index
    %c0_44 = arith.constant 0 : index
    %c0_45 = arith.constant 0 : index
    %59 = vector.load %arg2[%c0_42, %c0_43, %c0_44, %c0_45] : memref<1x4x2x128xf32, #tpu.memory_space<vmem>>, vector<1x1x2x128xf32>
    %60 = vector.shape_cast %59 : vector<1x1x2x128xf32> to vector<2x128xf32>
    %61 = vector.broadcast %58 : f32 to vector<2x128xf32>
    %62 = arith.mulf %61, %60 : vector<2x128xf32>
    %c9 = arith.constant 9 : index
    %63 = memref.load %arg3[%c9] : memref<16xf32, #tpu.memory_space<smem>>
    %c0_46 = arith.constant 0 : index
    %c1_47 = arith.constant 1 : index
    %c0_48 = arith.constant 0 : index
    %c0_49 = arith.constant 0 : index
    %64 = vector.load %arg2[%c0_46, %c1_47, %c0_48, %c0_49] : memref<1x4x2x128xf32, #tpu.memory_space<vmem>>, vector<1x1x2x128xf32>
    %65 = vector.shape_cast %64 : vector<1x1x2x128xf32> to vector<2x128xf32>
    %66 = vector.broadcast %63 : f32 to vector<2x128xf32>
    %67 = arith.mulf %66, %65 : vector<2x128xf32>
    %68 = arith.addf %62, %67 : vector<2x128xf32>
    %c10 = arith.constant 10 : index
    %69 = memref.load %arg3[%c10] : memref<16xf32, #tpu.memory_space<smem>>
    %c0_50 = arith.constant 0 : index
    %c2_51 = arith.constant 2 : index
    %c0_52 = arith.constant 0 : index
    %c0_53 = arith.constant 0 : index
    %70 = vector.load %arg2[%c0_50, %c2_51, %c0_52, %c0_53] : memref<1x4x2x128xf32, #tpu.memory_space<vmem>>, vector<1x1x2x128xf32>
    %71 = vector.shape_cast %70 : vector<1x1x2x128xf32> to vector<2x128xf32>
    %72 = vector.broadcast %69 : f32 to vector<2x128xf32>
    %73 = arith.mulf %72, %71 : vector<2x128xf32>
    %74 = arith.addf %68, %73 : vector<2x128xf32>
    %c11 = arith.constant 11 : index
    %75 = memref.load %arg3[%c11] : memref<16xf32, #tpu.memory_space<smem>>
    %c0_54 = arith.constant 0 : index
    %c3_55 = arith.constant 3 : index
    %c0_56 = arith.constant 0 : index
    %c0_57 = arith.constant 0 : index
    %76 = vector.load %arg2[%c0_54, %c3_55, %c0_56, %c0_57] : memref<1x4x2x128xf32, #tpu.memory_space<vmem>>, vector<1x1x2x128xf32>
    %77 = vector.shape_cast %76 : vector<1x1x2x128xf32> to vector<2x128xf32>
    %78 = vector.broadcast %75 : f32 to vector<2x128xf32>
    %79 = arith.mulf %78, %77 : vector<2x128xf32>
    %80 = arith.addf %74, %79 : vector<2x128xf32>
    %c2_58 = arith.constant 2 : index
    %81 = memref.load %arg4[%c2_58] : memref<4xf32, #tpu.memory_space<smem>>
    %82 = vector.broadcast %81 : f32 to vector<2x128xf32>
    %83 = arith.addf %80, %82 : vector<2x128xf32>
    %c0_59 = arith.constant 0 : index
    %c2_60 = arith.constant 2 : index
    %c0_61 = arith.constant 0 : index
    %c0_62 = arith.constant 0 : index
    %84 = vector.load %arg5[%c0_59, %c2_60, %c0_61, %c0_62] : memref<1x4x2x128xf32, #tpu.memory_space<vmem>>, vector<1x1x2x128xf32>
    %85 = vector.shape_cast %84 : vector<1x1x2x128xf32> to vector<2x128xf32>
    %86 = vector.shape_cast %83 : vector<2x128xf32> to vector<1x1x2x128xf32>
    tpu.vector_store %arg5[%c0_59, %c2_60, %c0_61, %c0_62], %86 {strides = array<i32>} : memref<1x4x2x128xf32, #tpu.memory_space<vmem>>, vector<1x1x2x128xf32>,
    %c12 = arith.constant 12 : index
    %87 = memref.load %arg3[%c12] : memref<16xf32, #tpu.memory_space<smem>>
    %c0_63 = arith.constant 0 : index
    %c0_64 = arith.constant 0 : index
    %c0_65 = arith.constant 0 : index
    %c0_66 = arith.constant 0 : index
    %88 = vector.load %arg2[%c0_63, %c0_64, %c0_65, %c0_66] : memref<1x4x2x128xf32, #tpu.memory_space<vmem>>, vector<1x1x2x128xf32>
    %89 = vector.shape_cast %88 : vector<1x1x2x128xf32> to vector<2x128xf32>
    %90 = vector.broadcast %87 : f32 to vector<2x128xf32>
    %91 = arith.mulf %90, %89 : vector<2x128xf32>
    %c13 = arith.constant 13 : index
    %92 = memref.load %arg3[%c13] : memref<16xf32, #tpu.memory_space<smem>>
    %c0_67 = arith.constant 0 : index
    %c1_68 = arith.constant 1 : index
    %c0_69 = arith.constant 0 : index
    %c0_70 = arith.constant 0 : index
    %93 = vector.load %arg2[%c0_67, %c1_68, %c0_69, %c0_70] : memref<1x4x2x128xf32, #tpu.memory_space<vmem>>, vector<1x1x2x128xf32>
    %94 = vector.shape_cast %93 : vector<1x1x2x128xf32> to vector<2x128xf32>
    %95 = vector.broadcast %92 : f32 to vector<2x128xf32>
    %96 = arith.mulf %95, %94 : vector<2x128xf32>
    %97 = arith.addf %91, %96 : vector<2x128xf32>
    %c14 = arith.constant 14 : index
    %98 = memref.load %arg3[%c14] : memref<16xf32, #tpu.memory_space<smem>>
    %c0_71 = arith.constant 0 : index
    %c2_72 = arith.constant 2 : index
    %c0_73 = arith.constant 0 : index
    %c0_74 = arith.constant 0 : index
    %99 = vector.load %arg2[%c0_71, %c2_72, %c0_73, %c0_74] : memref<1x4x2x128xf32, #tpu.memory_space<vmem>>, vector<1x1x2x128xf32>
    %100 = vector.shape_cast %99 : vector<1x1x2x128xf32> to vector<2x128xf32>
    %101 = vector.broadcast %98 : f32 to vector<2x128xf32>
    %102 = arith.mulf %101, %100 : vector<2x128xf32>
    %103 = arith.addf %97, %102 : vector<2x128xf32>
    %c15 = arith.constant 15 : index
    %104 = memref.load %arg3[%c15] : memref<16xf32, #tpu.memory_space<smem>>
    %c0_75 = arith.constant 0 : index
    %c3_76 = arith.constant 3 : index
    %c0_77 = arith.constant 0 : index
    %c0_78 = arith.constant 0 : index
    %105 = vector.load %arg2[%c0_75, %c3_76, %c0_77, %c0_78] : memref<1x4x2x128xf32, #tpu.memory_space<vmem>>, vector<1x1x2x128xf32>
    %106 = vector.shape_cast %105 : vector<1x1x2x128xf32> to vector<2x128xf32>
    %107 = vector.broadcast %104 : f32 to vector<2x128xf32>
    %108 = arith.mulf %107, %106 : vector<2x128xf32>
    %109 = arith.addf %103, %108 : vector<2x128xf32>
    %c3_79 = arith.constant 3 : index
    %110 = memref.load %arg4[%c3_79] : memref<4xf32, #tpu.memory_space<smem>>
    %111 = vector.broadcast %110 : f32 to vector<2x128xf32>
    %112 = arith.addf %109, %111 : vector<2x128xf32>
    %c0_80 = arith.constant 0 : index
    %c3_81 = arith.constant 3 : index
    %c0_82 = arith.constant 0 : index
    %c0_83 = arith.constant 0 : index
    %113 = vector.load %arg5[%c0_80, %c3_81, %c0_82, %c0_83] : memref<1x4x2x128xf32, #tpu.memory_space<vmem>>, vector<1x1x2x128xf32>
    %114 = vector.shape_cast %113 : vector<1x1x2x128xf32> to vector<2x128xf32>
    %115 = vector.shape_cast %112 : vector<2x128xf32> to vector<1x1x2x128xf32>
    tpu.vector_store %arg5[%c0_80, %c3_81, %c0_82, %c0_83], %115 {strides = array<i32>} : memref<1x4x2x128xf32, #tpu.memory_space<vmem>>, vector<1x1x2x128xf32>,
    return
  }
  func.func @transform_0(%arg0: i32, %arg1: i32) -> (i32, i32, i32, i32) {
    %c0_i32 = arith.constant 0 : i32
    %c0_i32_0 = arith.constant 0 : i32
    %c0_i32_1 = arith.constant 0 : i32
    return %arg0, %c0_i32, %arg1, %c0_i32_0 : i32, i32, i32, i32
  }
  func.func @transform_1(%arg0: i32, %arg1: i32) -> i32 {
    %c0_i32 = arith.constant 0 : i32
    %c0_i32_0 = arith.constant 0 : i32
    return %c0_i32 : i32
  }
  func.func @transform_2(%arg0: i32, %arg1: i32) -> i32 {
    %c0_i32 = arith.constant 0 : i32
    %c0_i32_0 = arith.constant 0 : i32
    return %c0_i32 : i32
  }
  func.func @transform_3(%arg0: i32, %arg1: i32) -> (i32, i32, i32, i32) {
    %c0_i32 = arith.constant 0 : i32
    %c0_i32_0 = arith.constant 0 : i32
    %c0_i32_1 = arith.constant 0 : i32
    return %arg0, %c0_i32, %arg1, %c0_i32_0 : i32, i32, i32, i32
  }
}

</mosaic_0001>

<llo_original>
// kernel: tpu_custom_call.1
$region0: #{tpu_custom_call.1}
  #allocation0 [shape = 'u32[]', space=smem, size = 0x4, offset = 0x4, fixed_abs, tag = 'smem constant byte address 0x4 - core index']
  #allocation1 [shape = 'u32[144,128]{1,0:T(1,128)}', space=vmem, size = 0x12000, scoped, tag = 'internal scratch']
  %s0 = inlined_call_operand.hbm [shape: f32[2,4,2,128], index: 0, kind: input, shape index: {}]
  %s1 = inlined_call_operand.vmem [shape: f32[16], index: 1, kind: input, shape index: {}]
  %s2 = inlined_call_operand.vmem [shape: f32[4], index: 2, kind: input, shape index: {}]
  %s3 = inlined_call_operand.hbm [shape: f32[2,4,2,128], index: 3, kind: output, shape index: {}]
  %s4 = sld [smem:[#allocation0]]
  $region57: #{tpu_custom_call.1} parent=0
    _
  %s6 = ssub.s32 1, %s4
  %s7 = scalar_select 0, %s6, %s4
  $region1: #{tpu_custom_call.1} parent=0
    #allocation2 [shape = 'u8[8192]{0}', space=vmem, size = 0x2000, scoped, tag = 'input window, operand 0']
    #allocation3 [shape = 's32[2]{0}', space=sflag, size = 0x8, scoped, tag = 'scoped memory for tpu_custom_call.1']
    #allocation4 [shape = 's32[2]{0}', space=sflag, size = 0x8, scoped, tag = 'scoped memory for tpu_custom_call.1']
    #allocation5 [shape = 's32[2]{0}', space=sflag, size = 0x8, scoped, tag = 'scoped memory for tpu_custom_call.1']
    #allocation6 [shape = 'u8[512]{0}', space=smem, size = 0x200, scoped, tag = 'input window, operand 1, single buffered']
    #allocation7 [shape = 'u8[512]{0}', space=smem, size = 0x200, scoped, tag = 'input window, operand 2, single buffered']
    #allocation8 [shape = 's32[1]{0}', space=sflag, size = 0x4, scoped, tag = 'scoped memory for tpu_custom_call.1']
    #allocation9 [shape = 'u8[8192]{0}', space=vmem, size = 0x2000, scoped, tag = 'output window, operand 0']
    %8 = vsyncpa [#allocation3], 0
    %s9 = scalar_lea.sflag [#allocation3], 1
    %10 = vsyncpa %s9, 0
    %11 = vsyncpa [#allocation5], 0
    %12 = vsyncpa [#allocation8], 0
    %13 = vsyncpa [#allocation4], 0
    %s14 = scalar_lea.sflag [#allocation4], 1
    %15 = vsyncpa %s14, 0
    loop: start=0, step=1, limit=4
    $region2: #{tpu_custom_call.1} parent=1 // loop_pre_header
      _
    $region3: #{tpu_custom_call.1} parent=1 // loop_header
      %s17 = sphi 0, %s21
      %p18 = scmp.ge.s32.totalorder %s17, 4
      %s24 = sphi 0, %s36
      %s25 = sphi 0, %s32
      %s26 = sphi 0, %s24
      %s27 = sphi 0, %s25
      %s28 = sphi 0, %s26
      %s29 = sphi 0, %s27
      %s41 = sphi 0, %s43
      %s44 = sphi 0, %s41
      %s45 = sphi 0, %s44
      %s61 = sphi 0, %s45
      %s65 = sphi 0, %s65
      %s67 = sphi 0, %s65
      %s68 = sphi 0, %s67
      %s82 = sphi 0, %s68
      %s86 = sphi 0, %s86
      %s88 = sphi 0, %s86
      %s89 = sphi 0, %s88
      %s103 = sphi 0, %s89
      %s111 = sphi 0, %s113
      %s114 = sphi 0, %s111
      %s115 = sphi 0, %s114
      %s131 = sphi 0, %s115
    $region4: #{tpu_custom_call.1} parent=1 // loop_header_branch
      %20 = sbr.rel (%p18) target = $region8
    $region5: #{tpu_custom_call.1} parent=1 // loop_body
      %s22 = ssub.s32 %s17, 1
      %s23 = ssub.s32 %s17, 2
      %s30 = sadd.s32 1, %s25
      %p31 = scmp.ge.s32.totalorder %s30, 1
      %s32 = scalar_select %p31, 0, %s30
      %s33 = sadd.s32 1, %s24
      %s34 = scalar_select %p31, %s33, %s24
      %p35 = scmp.ge.s32.totalorder %s34, 2
      %s36 = scalar_select %p35, 0, %s34
      %s37 = ssub.s32 %s24, %s36
      %s38 = ssub.s32 %s25, %s32
      %s39 = sor.u32 %s37, %s38
      %p40 = scmp.eq.s32.totalorder %s39, 0
      %s42 = sadd.s32 %s41, 1
      %s43 = scalar_select %p40, %s41, %s42
      %p46 = pneg %p40
      %p47 = scmp.eq.s32.totalorder %s17, 1
      %p48 = por %p46, %p47
      %p49 = scmp.ne.s32.totalorder %s41, %s44
      %p50 = scmp.eq.s32.totalorder %s17, 0
      %p51 = por %p49, %p50
      %p52 = scmp.ne.s32.totalorder %s41, %s44
      %p53 = scmp.eq.s32.totalorder %s22, 1
      %p54 = por %p52, %p53
      %p55 = scmp.ne.s32.totalorder %s44, %s45
      %p56 = scmp.eq.s32.totalorder %s22, 0
      %p57 = por %p55, %p56
      %p58 = scmp.ne.s32.totalorder %s44, %s45
      %p59 = scmp.eq.s32.totalorder %s23, 1
      %p60 = por %p58, %p59
      %p62 = scmp.ne.s32.totalorder %s45, %s61
      %p63 = scmp.eq.s32.totalorder %s23, 0
      %p64 = por %p62, %p63
      %s66 = sadd.s32 %s65, 1
      %p69 = scmp.eq.s32.totalorder %s17, 1
      %p70 = scmp.ne.s32.totalorder %s65, %s67
      %p71 = scmp.eq.s32.totalorder %s17, 0
      %p72 = por %p70, %p71
      %p73 = scmp.ne.s32.totalorder %s65, %s67
      %p74 = scmp.eq.s32.totalorder %s22, 1
      %p75 = por %p73, %p74
      %p76 = scmp.ne.s32.totalorder %s67, %s68
      %p77 = scmp.eq.s32.totalorder %s22, 0
      %p78 = por %p76, %p77
      %p79 = scmp.ne.s32.totalorder %s67, %s68
      %p80 = scmp.eq.s32.totalorder %s23, 1
      %p81 = por %p79, %p80
      %p83 = scmp.ne.s32.totalorder %s68, %s82
      %p84 = scmp.eq.s32.totalorder %s23, 0
      %p85 = por %p83, %p84
      %s87 = sadd.s32 %s86, 1
      %p90 = scmp.eq.s32.totalorder %s17, 1
      %p91 = scmp.ne.s32.totalorder %s86, %s88
      %p92 = scmp.eq.s32.totalorder %s17, 0
      %p93 = por %p91, %p92
      %p94 = scmp.ne.s32.totalorder %s86, %s88
      %p95 = scmp.eq.s32.totalorder %s22, 1
      %p96 = por %p94, %p95
      %p97 = scmp.ne.s32.totalorder %s88, %s89
      %p98 = scmp.eq.s32.totalorder %s22, 0
      %p99 = por %p97, %p98
      %p100 = scmp.ne.s32.totalorder %s88, %s89
      %p101 = scmp.eq.s32.totalorder %s23, 1
      %p102 = por %p100, %p101
      %p104 = scmp.ne.s32.totalorder %s89, %s103
      %p105 = scmp.eq.s32.totalorder %s23, 0
      %p106 = por %p104, %p105
      %s107 = ssub.s32 %s24, %s36
      %s108 = ssub.s32 %s25, %s32
      %s109 = sor.u32 %s107, %s108
      %p110 = scmp.eq.s32.totalorder %s109, 0
      %s112 = sadd.s32 %s111, 1
      %s113 = scalar_select %p110, %s111, %s112
      %p116 = pneg %p110
      %p117 = scmp.eq.s32.totalorder %s17, 1
      %p118 = por %p116, %p117
      %p119 = scmp.ne.s32.totalorder %s111, %s114
      %p120 = scmp.eq.s32.totalorder %s17, 0
      %p121 = por %p119, %p120
      %p122 = scmp.ne.s32.totalorder %s111, %s114
      %p123 = scmp.eq.s32.totalorder %s22, 1
      %p124 = por %p122, %p123
      %p125 = scmp.ne.s32.totalorder %s114, %s115
      %p126 = scmp.eq.s32.totalorder %s22, 0
      %p127 = por %p125, %p126
      %p128 = scmp.ne.s32.totalorder %s114, %s115
      %p129 = scmp.eq.s32.totalorder %s23, 1
      %p130 = por %p128, %p129
      %p132 = scmp.ne.s32.totalorder %s115, %s131
      %p133 = scmp.eq.s32.totalorder %s23, 0
      %p134 = por %p132, %p133
      %p135 = scmp.le.s32.totalorder 1, %s17
      %p136 = scmp.lt.s32.totalorder %s17, 3
      %p137 = pnand %p135, %p136
      %p138 = pneg %p137
      // Predicated region
      $region9: #{tpu_custom_call.1} parent=5 // pred_check
        _
      $region10: #{tpu_custom_call.1} parent=5 // pred_check_branch
        %140 = sbr.rel (%p137) target = $region12
      $region11: #{tpu_custom_call.1} parent=5 // pred_region
        %s141 = ssub.s32 %s17, 1
        // Predicated region
        $region13: #{tpu_custom_call.1} parent=11 // pred_check
          %p142 = pneg %p78
        $region14: #{tpu_custom_call.1} parent=11 // pred_check_branch
          %144 = sbr.rel (%p142) target = $region16
        $region15: #{tpu_custom_call.1} parent=11 // pred_region
          %s146 = ssub.s32 16, 16
          %147 = vsyncadd [#allocation5], %s146
          %s149 = sshll.u32 %s1, 4
          %s150 = int_to_ptr.vmem [resolvable:$true] %s149
          %152 = dma.vmem_to_smem %s150, 16, [#allocation6], [#allocation5]
        $region16: #{tpu_custom_call.1} parent=11 // pred_fallthru
          _
        // Predicated region
        $region17: #{tpu_custom_call.1} parent=11 // pred_check
          %p153 = pneg %p99
        $region18: #{tpu_custom_call.1} parent=11 // pred_check_branch
          %155 = sbr.rel (%p153) target = $region20
        $region19: #{tpu_custom_call.1} parent=11 // pred_region
          %s157 = ssub.s32 16, 16
          %158 = vsyncadd [#allocation8], %s157
          %s160 = sshll.u32 %s2, 4
          %s161 = int_to_ptr.vmem [resolvable:$true] %s160
          %163 = dma.vmem_to_smem %s161, 16, [#allocation7], [#allocation8]
        $region20: #{tpu_custom_call.1} parent=11 // pred_fallthru
          _
      $region12: #{tpu_custom_call.1} parent=5 // pred_fallthru
        _
      %p164 = scmp.lt.s32.totalorder %s17, 2
      // Predicated region
      $region21: #{tpu_custom_call.1} parent=5 // pred_check
        %p165 = pneg %p164
      $region22: #{tpu_custom_call.1} parent=5 // pred_check_branch
        %167 = sbr.rel (%p165) target = $region24
      $region23: #{tpu_custom_call.1} parent=5 // pred_region
        // Predicated region
        $region25: #{tpu_custom_call.1} parent=23 // pred_check
          %p168 = pneg %p51
        $region26: #{tpu_custom_call.1} parent=23 // pred_check_branch
          %170 = sbr.rel (%p168) target = $region28
        $region27: #{tpu_custom_call.1} parent=23 // pred_region
          %s171 = sand.u32 %s41, 1
          %s172 = scalar_lea.sflag [#allocation3], %s171
          %s173 = sand.u32 %s41, 1
          %s174 = smul.addr %s173, 8
          %s175 = scalar_lea.vmem [#allocation2], %s174
          %s177 = ssub.s32 128, 128
          %178 = vsyncadd %s172, %s177
          %s179 = smul.addr %s24, 4
          %s180 = sadd.s32 %s25, %s179
          %s181 = smul.addr %s180, 32
          %s182 = scalar_lea.hbm %s0, %s181
          %s183 = sshll.u32 %s175, 4
          %s184 = int_to_ptr.vmem [resolvable:$true] %s183
          %189 = dma.hbm_to_vmem [thread:$0]  %s182, 128, %s184, %s172, 32, 32, 2
        $region28: #{tpu_custom_call.1} parent=23 // pred_fallthru
          _
      $region24: #{tpu_custom_call.1} parent=5 // pred_fallthru
        _
      %p190 = scmp.le.s32.totalorder 1, %s17
      %p191 = scmp.lt.s32.totalorder %s17, 3
      %p192 = pnand %p190, %p191
      %p193 = pneg %p192
      // Predicated region
      $region29: #{tpu_custom_call.1} parent=5 // pred_check
        _
      $region30: #{tpu_custom_call.1} parent=5 // pred_check_branch
        %195 = sbr.rel (%p192) target = $region32
      $region31: #{tpu_custom_call.1} parent=5 // pred_region
        %s196 = ssub.s32 %s17, 1
        %s197 = sand.u32 %s44, 1
        %s198 = scalar_lea.sflag [#allocation3], %s197
        %s199 = sand.u32 %s44, 1
        %s200 = smul.addr %s199, 8
        %s201 = scalar_lea.vmem [#allocation2], %s200
        // Predicated region
        $region33: #{tpu_custom_call.1} parent=31 // pred_check
          %p202 = pneg %p57
        $region34: #{tpu_custom_call.1} parent=31 // pred_check_branch
          %204 = sbr.rel (%p202) target = $region36
        $region35: #{tpu_custom_call.1} parent=31 // pred_region
          %205 = dma.done %s198, 128
        $region36: #{tpu_custom_call.1} parent=31 // pred_fallthru
          _
        // Predicated region
        $region37: #{tpu_custom_call.1} parent=31 // pred_check
          %p206 = pneg %p78
        $region38: #{tpu_custom_call.1} parent=31 // pred_check_branch
          %208 = sbr.rel (%p206) target = $region40
        $region39: #{tpu_custom_call.1} parent=31 // pred_region
          %209 = dma.done [#allocation5], 16
        $region40: #{tpu_custom_call.1} parent=31 // pred_fallthru
          _
        // Predicated region
        $region41: #{tpu_custom_call.1} parent=31 // pred_check
          %p210 = pneg %p99
        $region42: #{tpu_custom_call.1} parent=31 // pred_check_branch
          %212 = sbr.rel (%p210) target = $region44
        $region43: #{tpu_custom_call.1} parent=31 // pred_region
          %213 = dma.done [#allocation8], 16
        $region44: #{tpu_custom_call.1} parent=31 // pred_fallthru
          _
        %214 = sfence
        %s215 = sand.u32 %s44, 1
        %s216 = scalar_lea.sflag [#allocation3], %s215
        %s217 = sand.u32 %s44, 1
        %s218 = smul.addr %s217, 8
        %s219 = scalar_lea.vmem [#allocation2], %s218
        %p220 = pneg %p57
        %p221 = pneg %p54
        %p222 = pneg %p78
        %p223 = pneg %p75
        %p224 = pneg %p99
        %p225 = pneg %p96
        %p226 = pneg %p127
        %p227 = pneg %p124
        %s228 = sand.u32 %s114, 1
        %s229 = scalar_lea.sflag [#allocation4], %s228
        %s230 = sand.u32 %s114, 1
        %s231 = smul.addr %s230, 8
        %s232 = scalar_lea.vmem [#allocation9], %s231
        %s233 = sld [smem:[#allocation6]]
        %v234 = vld [vmem:[%s201] sm:$0x3]
        %v235 = vstv %s233
        %v236 = vmul.f32 %v235, %v234
        %s237 = sld [smem:[#allocation6 + $0x1]]
        %s238 = scalar_lea.vmem %s201, 2 [#allocation2]
        %v239 = vld [vmem:[%s238] sm:$0x3]
        %v240 = vstv %s237
        %v241 = vmul.f32 %v240, %v239
        %v242 = vadd.f32 %v236, %v241
        %s243 = sld [smem:[#allocation6 + $0x2]]
        %s244 = scalar_lea.vmem %s201, 4 [#allocation2]
        %v245 = vld [vmem:[%s244] sm:$0x3]
        %v246 = vstv %s243
        %v247 = vmul.f32 %v246, %v245
        %v248 = vadd.f32 %v242, %v247
        %s249 = sld [smem:[#allocation6 + $0x3]]
        %s250 = scalar_lea.vmem %s201, 6 [#allocation2]
        %v251 = vld [vmem:[%s250] sm:$0x3]
        %v252 = vstv %s249
        %v253 = vmul.f32 %v252, %v251
        %v254 = vadd.f32 %v248, %v253
        %s255 = sld [smem:[#allocation7]]
        %v256 = vstv %s255
        %v257 = vadd.f32 %v254, %v256
        %258 = vst [vmem:[%s232] sm:$0x3] %v257
        %s259 = sld [smem:[#allocation6 + $0x4]]
        %v260 = vld [vmem:[%s201] sm:$0x3]
        %v261 = vstv %s259
        %v262 = vmul.f32 %v261, %v260
        %s263 = sld [smem:[#allocation6 + $0x5]]
        %v264 = vld [vmem:[%s238] sm:$0x3]
        %v265 = vstv %s263
        %v266 = vmul.f32 %v265, %v264
        %v267 = vadd.f32 %v262, %v266
        %s268 = sld [smem:[#allocation6 + $0x6]]
        %v269 = vld [vmem:[%s244] sm:$0x3]
        %v270 = vstv %s268
        %v271 = vmul.f32 %v270, %v269
        %v272 = vadd.f32 %v267, %v271
        %s273 = sld [smem:[#allocation6 + $0x7]]
        %v274 = vld [vmem:[%s250] sm:$0x3]
        %v275 = vstv %s273
        %v276 = vmul.f32 %v275, %v274
        %v277 = vadd.f32 %v272, %v276
        %s278 = sld [smem:[#allocation7 + $0x1]]
        %v279 = vstv %s278
        %v280 = vadd.f32 %v277, %v279
        %s281 = scalar_lea.vmem %s232, 2 [#allocation9]
        %282 = vst [vmem:[%s281] sm:$0x3] %v280
        %s283 = sld [smem:[#allocation6 + $0x8]]
        %v284 = vld [vmem:[%s201] sm:$0x3]
        %v285 = vstv %s283
        %v286 = vmul.f32 %v285, %v284
        %s287 = sld [smem:[#allocation6 + $0x9]]
        %v288 = vld [vmem:[%s238] sm:$0x3]
        %v289 = vstv %s287
        %v290 = vmul.f32 %v289, %v288
        %v291 = vadd.f32 %v286, %v290
        %s292 = sld [smem:[#allocation6 + $0xa]]
        %v293 = vld [vmem:[%s244] sm:$0x3]
        %v294 = vstv %s292
        %v295 = vmul.f32 %v294, %v293
        %v296 = vadd.f32 %v291, %v295
        %s297 = sld [smem:[#allocation6 + $0xb]]
        %v298 = vld [vmem:[%s250] sm:$0x3]
        %v299 = vstv %s297
        %v300 = vmul.f32 %v299, %v298
        %v301 = vadd.f32 %v296, %v300
        %s302 = sld [smem:[#allocation7 + $0x2]]
        %v303 = vstv %s302
        %v304 = vadd.f32 %v301, %v303
        %s305 = scalar_lea.vmem %s232, 4 [#allocation9]
        %306 = vst [vmem:[%s305] sm:$0x3] %v304
        %s307 = sld [smem:[#allocation6 + $0xc]]
        %v308 = vld [vmem:[%s201] sm:$0x3]
        %v309 = vstv %s307
        %v310 = vmul.f32 %v309, %v308
        %s311 = sld [smem:[#allocation6 + $0xd]]
        %v312 = vld [vmem:[%s238] sm:$0x3]
        %v313 = vstv %s311
        %v314 = vmul.f32 %v313, %v312
        %v315 = vadd.f32 %v310, %v314
        %s316 = sld [smem:[#allocation6 + $0xe]]
        %v317 = vld [vmem:[%s244] sm:$0x3]
        %v318 = vstv %s316
        %v319 = vmul.f32 %v318, %v317
        %v320 = vadd.f32 %v315, %v319
        %s321 = sld [smem:[#allocation6 + $0xf]]
        %v322 = vld [vmem:[%s250] sm:$0x3]
        %v323 = vstv %s321
        %v324 = vmul.f32 %v323, %v322
        %v325 = vadd.f32 %v320, %v324
        %s326 = sld [smem:[#allocation7 + $0x3]]
        %v327 = vstv %s326
        %v328 = vadd.f32 %v325, %v327
        %s329 = scalar_lea.vmem %s232, 6 [#allocation9]
        %330 = vst [vmem:[%s329] sm:$0x3] %v328
        %s331 = sand.u32 %s114, 1
        %s332 = scalar_lea.sflag [#allocation4], %s331
        %s333 = sand.u32 %s114, 1
        %s334 = smul.addr %s333, 8
        %s335 = scalar_lea.vmem [#allocation9], %s334
        // Predicated region
        $region45: #{tpu_custom_call.1} parent=31 // pred_check
          %p336 = pneg %p124
        $region46: #{tpu_custom_call.1} parent=31 // pred_check_branch
          %338 = sbr.rel (%p336) target = $region48
        $region47: #{tpu_custom_call.1} parent=31 // pred_region
          %s340 = ssub.s32 128, 128
          %341 = vsyncadd %s332, %s340
          %s342 = smul.addr %s26, 4
          %s343 = sadd.s32 %s27, %s342
          %s344 = smul.addr %s343, 32
          %s345 = scalar_lea.hbm %s3, %s344
          %s346 = sshll.u32 %s335, 4
          %s347 = int_to_ptr.vmem [resolvable:$true] %s346
          %352 = dma.vmem_to_hbm [thread:$0]  %s347, 128, %s345, %s332, 32, 32, 2
        $region48: #{tpu_custom_call.1} parent=31 // pred_fallthru
          _
      $region32: #{tpu_custom_call.1} parent=5 // pred_fallthru
        _
      %p353 = scmp.le.s32.totalorder 2, %s17
      // Predicated region
      $region49: #{tpu_custom_call.1} parent=5 // pred_check
        %p354 = pneg %p353
      $region50: #{tpu_custom_call.1} parent=5 // pred_check_branch
        %356 = sbr.rel (%p354) target = $region52
      $region51: #{tpu_custom_call.1} parent=5 // pred_region
        %s357 = ssub.s32 %s17, 2
        // Predicated region
        $region53: #{tpu_custom_call.1} parent=51 // pred_check
          %p358 = pneg %p130
        $region54: #{tpu_custom_call.1} parent=51 // pred_check_branch
          %360 = sbr.rel (%p358) target = $region56
        $region55: #{tpu_custom_call.1} parent=51 // pred_region
          %s361 = sand.u32 %s115, 1
          %s362 = scalar_lea.sflag [#allocation4], %s361
          %s363 = sand.u32 %s115, 1
          %s364 = smul.addr %s363, 8
          %s365 = scalar_lea.vmem [#allocation9], %s364
          %366 = dma.done %s362, 128
        $region56: #{tpu_custom_call.1} parent=51 // pred_fallthru
          _
      $region52: #{tpu_custom_call.1} parent=5 // pred_fallthru
        _
    $region6: #{tpu_custom_call.1} parent=1 // loop_footer
      %s21 = sadd.s32 1, %s17
    $region7: #{tpu_custom_call.1} parent=1 // loop_footer_branch
      %16 = sbr.rel target = $region3
    $region8: #{tpu_custom_call.1} parent=1 // loop_exit
      _
    %367 = vsyncpa [#allocation3], 1
    %s368 = scalar_lea.sflag [#allocation3], 1
    %369 = vsyncpa %s368, 1
    %370 = vsyncpa [#allocation4], 1
    %s371 = scalar_lea.sflag [#allocation4], 1
    %372 = vsyncpa %s371, 1
    %373 = vsyncpa [#allocation5], 1
    %s374 = scalar_lea.sflag [#allocation5], 1
    %375 = vsyncpa %s374, 1
    %376 = vsyncpa [#allocation8], 1

</llo_original>
